<compile_context>
chip_gen: v6e
topology: v6e:2x2x1
jax: 0.10.0
libtpu: 0.0.40
codegen_flags: <defaults>
</compile_context>

<pallas_src>
import functools

import jax
import jax.numpy as jnp
from jax.experimental import pallas as pl
from jax.experimental.pallas import tpu as pltpu

LANES = 128
MAX_TILE_BYTES = 1 << 20   # native input bytes per block (double-buffered -> 2 MiB)
MAX_TILE_ROWS = 4096       # hard cap on rows per block


def _round_up(x, m):
    return ((x + m - 1) // m) * m


def _hinge_sums_kernel(y_ref, out_ref, *, signs, full_rows, rem_lanes,
                       tile_rows, needs_mask):
    """Accumulate (8,128)-shaped partial sums of relu(1 + sign*y) per sign.

    out_ref: (1, len(signs), 8, 128) f32, resident across the inner (reduction)
    grid axis -> acts as the accumulator (no scratch, no per-step XLU reduce).
    """
    p = pl.program_id(0)   # parallel split (megacore sharding)
    i = pl.program_id(1)   # reduction step

    @pl.when(i == 0)
    def _():
        out_ref[...] = jnp.zeros_like(out_ref)

    y = y_ref[...].astype(jnp.float32)          # cast per-tile on the VPU

    if needs_mask:
        # Row-based validity: avoids a per-element 32-bit linear-index multiply
        # and cannot overflow int32 for any realistic tensor size.
        base_row = (p * pl.num_programs(1) + i) * tile_rows
        row = jax.lax.broadcasted_iota(jnp.int32, y.shape, 0) + base_row
        valid = row < full_rows
        if rem_lanes:
            lane = jax.lax.broadcasted_iota(jnp.int32, y.shape, 1)
            valid = valid | ((row == full_rows) & (lane < rem_lanes))

    for s_idx, sign in enumerate(signs):
        hinge = jnp.maximum(1.0 + sign * y, 0.0)
        if needs_mask:
            hinge = jnp.where(valid, hinge, 0.0)
        # Vreg-shaped partial reduction: pure elementwise adds, hides under DMA.
        partial = hinge.reshape(tile_rows // 8, 8, LANES).sum(axis=0)
        out_ref[0, s_idx] += partial


def _hinge_means(y, signs):
    """mean(relu(1 + sign*y)) for each sign, in a single HBM pass over y."""
    total = int(y.size)
    flat = y.reshape(-1)                         # no copy, native dtype
    full_rows, rem_lanes = divmod(total, LANES)
    if rem_lanes:
        # Rare path: lane-pad the tail (<128 elems; values masked in-kernel).
        flat = jnp.concatenate(
            [flat, jnp.zeros((LANES - rem_lanes,), dtype=flat.dtype)])
    y2d = flat.reshape(-1, LANES)
    rows = y2d.shape[0]

    itemsize = y2d.dtype.itemsize
    # Sublane multiple for the native dtype (8 for 4-byte, 16 for 2-byte, ...).
    sub = {4: 8, 2: 16, 1: 32}.get(itemsize, 8)
    max_rows = max(sub, min(MAX_TILE_ROWS, MAX_TILE_BYTES // (LANES * itemsize)))
    tile_rows = min(max_rows, _round_up(rows, sub))

    nblocks = pl.cdiv(rows, tile_rows)
    splits = 2 if nblocks >= 2 else 1            # use both TCs on megacore parts
    inner = pl.cdiv(nblocks, splits)
    covered_rows = splits * inner * tile_rows
    needs_mask = (covered_rows != rows) or (rem_lanes != 0)
    nsig = len(signs)

    if splits * inner == nblocks:
        in_map = lambda p, i: (p * inner + i, 0)
    else:
        # Keep every block index in-bounds; duplicated blocks are masked to 0.
        in_map = lambda p, i: (jnp.minimum(p * inner + i, nblocks - 1), 0)

    kernel = functools.partial(
        _hinge_sums_kernel, signs=tuple(signs), full_rows=full_rows,
        rem_lanes=rem_lanes, tile_rows=tile_rows, needs_mask=needs_mask)

    partials = pl.pallas_call(
        kernel,
        out_shape=jax.ShapeDtypeStruct((splits, nsig, 8, LANES), jnp.float32),
        grid_spec=pltpu.PrefetchScalarGridSpec(
            num_scalar_prefetch=0,
            grid=(splits, inner),
            in_specs=[pl.BlockSpec((tile_rows, LANES), in_map)],
            out_specs=pl.BlockSpec((1, nsig, 8, LANES),
                                   lambda p, i: (p, 0, 0, 0)),
        ),
        compiler_params=pltpu.CompilerParams(
            dimension_semantics=("parallel", "arbitrary")),
    )(y2d)

    # Tiny final reduction of (splits * nsig * 8 * 128) partial sums in XLA.
    return jnp.sum(partials, axis=(0, 2, 3)) * (1.0 / float(total))


def gan_hinge_d_loss(y, as_real=True):
    """Pallas equivalent of GANHingeLoss().forward(y, as_real)."""
    # sign = -1 for "real" (relu(1 - y)), +1 for "fake" (relu(1 + y)).
    sign = -1.0 if as_real else 1.0
    return _hinge_means(y, (sign,))[0]


def gan_hinge_d_loss_both(y):
    """Fused (real, fake) hinge losses over the same tensor: one HBM pass."""
    losses = _hinge_means(y, (-1.0, 1.0))
    return losses[0], losses[1]


def gan_hinge_g_loss(y):
    # TODO(synk): G_loss = -mean(y) is not on the forward path; plain JAX.
    return -jnp.mean(y.astype(jnp.float32))


if __name__ == "__main__":
    key = jax.random.PRNGKey(0)
    # Discriminator-style output map, NCHW-like small shape.
    y = jax.random.normal(key, (2, 4, 16, 16), dtype=jnp.float32)

    loss_real = jax.block_until_ready(gan_hinge_d_loss(y, as_real=True))
    loss_fake = jax.block_until_ready(gan_hinge_d_loss(y, as_real=False))
    ref_real = jnp.mean(jnp.maximum(1.0 - y, 0.0))
    ref_fake = jnp.mean(jnp.maximum(1.0 + y, 0.0))
    assert jnp.allclose(loss_real, ref_real, atol=1e-5), (loss_real, ref_real)
    assert jnp.allclose(loss_fake, ref_fake, atol=1e-5), (loss_fake, ref_fake)

    # Fused real+fake over the same tensor (single HBM pass).
    f_real, f_fake = jax.block_until_ready(gan_hinge_d_loss_both(y))
    assert jnp.allclose(f_real, ref_real, atol=1e-5), (f_real, ref_real)
    assert jnp.allclose(f_fake, ref_fake, atol=1e-5), (f_fake, ref_fake)

    # bf16 input: cast happens in-kernel (halves HBM traffic vs wrapper cast).
    y_bf = y.astype(jnp.bfloat16)
    loss_bf = jax.block_until_ready(gan_hinge_d_loss(y_bf, as_real=True))
    ref_bf = jnp.mean(jnp.maximum(1.0 - y_bf.astype(jnp.float32), 0.0))
    assert jnp.allclose(loss_bf, ref_bf, atol=1e-5), (loss_bf, ref_bf)

    # Odd size (total % 128 != 0): exercises the lane-tail masking path.
    y_odd = jax.random.normal(jax.random.PRNGKey(2), (946,), dtype=jnp.float32)
    loss_odd = jax.block_until_ready(gan_hinge_d_loss(y_odd, as_real=True))
    ref_odd = jnp.mean(jnp.maximum(1.0 - y_odd, 0.0))
    assert jnp.allclose(loss_odd, ref_odd, atol=1e-5), (loss_odd, ref_odd)

    # Larger map: 2-way parallel split with a partially out-of-bounds edge block.
    y_big = jax.random.normal(jax.random.PRNGKey(1), (2, 10, 160, 128),
                              dtype=jnp.float32)
    loss_big = jax.block_until_ready(gan_hinge_d_loss(y_big, as_real=False))
    ref_big = jnp.mean(jnp.maximum(1.0 + y_big, 0.0))
    assert jnp.allclose(loss_big, ref_big, atol=1e-5), (loss_big, ref_big)

    # Odd block count: exercises the clamped (duplicated-but-masked) index map.
    y_big2 = jax.random.normal(jax.random.PRNGKey(3), (2, 16, 160, 128),
                               dtype=jnp.float32)
    loss_big2 = jax.block_until_ready(gan_hinge_d_loss(y_big2, as_real=True))
    ref_big2 = jnp.mean(jnp.maximum(1.0 - y_big2, 0.0))
    assert jnp.allclose(loss_big2, ref_big2, atol=1e-5), (loss_big2, ref_big2)

    print("KERNEL_OK")
</pallas_src>

<mosaic_0001>
module attributes {stable_mosaic.version = 11 : i64} {
  func.func @_hinge_sums_kernel(%arg0: i32, %arg1: i32, %arg2: memref<16x128xf32, #tpu.memory_space<vmem>>, %arg3: memref<1x1x8x128xf32, #tpu.memory_space<vmem>>) attributes {dimension_semantics = [#tpu.dimension_semantics<parallel>, #tpu.dimension_semantics<arbitrary>], iteration_bounds = array<i64: 1, 1>, scalar_prefetch = 0 : i64, scratch_operands = 0 : i64, tpu.core_type = #tpu.core_type<tc>, window_params = [{transform_indices = @transform_0, window_bounds = array<i64: 16, 128>}, {transform_indices = @transform_1, window_bounds = array<i64: 1, 1, 8, 128>}]} {
    %c0_i32 = arith.constant 0 : i32
    %0 = arith.cmpi eq, %arg1, %c0_i32 : i32
    %1 = arith.extui %0 : i1 to i32
    %c0_i32_0 = arith.constant 0 : i32
    %2 = arith.cmpi ne, %1, %c0_i32_0 : i32
    scf.if %2 {
      %cst_13 = arith.constant 0.000000e+00 : f32
      %18 = vector.broadcast %cst_13 : f32 to vector<1x1x8x128xf32>
      %c0_14 = arith.constant 0 : index
      %c0_15 = arith.constant 0 : index
      %c0_16 = arith.constant 0 : index
      %c0_17 = arith.constant 0 : index
      %19 = vector.load %arg3[%c0_14, %c0_15, %c0_16, %c0_17] : memref<1x1x8x128xf32, #tpu.memory_space<vmem>>, vector<1x1x8x128xf32>
      tpu.vector_store %arg3[%c0_14, %c0_15, %c0_16, %c0_17], %18 {strides = array<i32>} : memref<1x1x8x128xf32, #tpu.memory_space<vmem>>, vector<1x1x8x128xf32>,
    } else {
    }
    %c0 = arith.constant 0 : index
    %c0_1 = arith.constant 0 : index
    %3 = vector.load %arg2[%c0, %c0_1] : memref<16x128xf32, #tpu.memory_space<vmem>>, vector<16x128xf32>
    %cst = arith.constant -1.000000e+00 : f32
    %4 = vector.broadcast %cst : f32 to vector<16x128xf32>
    %5 = arith.mulf %4, %3 : vector<16x128xf32>
    %cst_2 = arith.constant 1.000000e+00 : f32
    %6 = vector.broadcast %cst_2 : f32 to vector<16x128xf32>
    %7 = arith.addf %6, %5 : vector<16x128xf32>
    %cst_3 = arith.constant 0.000000e+00 : f32
    %8 = vector.broadcast %cst_3 : f32 to vector<16x128xf32>
    %9 = arith.maximumf %7, %8 : vector<16x128xf32>
    %10 = vector.shape_cast %9 : vector<16x128xf32> to vector<2x8x128xf32>
    %cst_4 = arith.constant dense<0.000000e+00> : vector<8x128xf32>
    %11 = vector.multi_reduction <add>, %10, %cst_4 [0] : vector<2x8x128xf32> to vector<8x128xf32>
    %c0_5 = arith.constant 0 : index
    %c0_6 = arith.constant 0 : index
    %c0_7 = arith.constant 0 : index
    %c0_8 = arith.constant 0 : index
    %12 = vector.load %arg3[%c0_5, %c0_6, %c0_7, %c0_8] : memref<1x1x8x128xf32, #tpu.memory_space<vmem>>, vector<1x1x8x128xf32>
    %13 = vector.shape_cast %12 : vector<1x1x8x128xf32> to vector<8x128xf32>
    %14 = arith.addf %13, %11 : vector<8x128xf32>
    %c0_9 = arith.constant 0 : index
    %c0_10 = arith.constant 0 : index
    %c0_11 = arith.constant 0 : index
    %c0_12 = arith.constant 0 : index
    %15 = vector.load %arg3[%c0_9, %c0_10, %c0_11, %c0_12] : memref<1x1x8x128xf32, #tpu.memory_space<vmem>>, vector<1x1x8x128xf32>
    %16 = vector.shape_cast %15 : vector<1x1x8x128xf32> to vector<8x128xf32>
    %17 = vector.shape_cast %14 : vector<8x128xf32> to vector<1x1x8x128xf32>
    tpu.vector_store %arg3[%c0_9, %c0_10, %c0_11, %c0_12], %17 {strides = array<i32>} : memref<1x1x8x128xf32, #tpu.memory_space<vmem>>, vector<1x1x8x128xf32>,
    return
  }
  func.func @transform_0(%arg0: i32, %arg1: i32) -> (i32, i32) {
    %c1_i32 = arith.constant 1 : i32
    %0 = arith.muli %arg0, %c1_i32 : i32
    %1 = arith.addi %0, %arg1 : i32
    %c0_i32 = arith.constant 0 : i32
    %c0_i32_0 = arith.constant 0 : i32
    return %1, %c0_i32 : i32, i32
  }
  func.func @transform_1(%arg0: i32, %arg1: i32) -> (i32, i32, i32, i32) {
    %c0_i32 = arith.constant 0 : i32
    %c0_i32_0 = arith.constant 0 : i32
    %c0_i32_1 = arith.constant 0 : i32
    %c0_i32_2 = arith.constant 0 : i32
    return %arg0, %c0_i32, %c0_i32_0, %c0_i32_1 : i32, i32, i32, i32
  }
}

</mosaic_0001>

<llo_original>
// kernel: tpu_custom_call.1
$region0: #{tpu_custom_call.1}
  #allocation0 [shape = 'u32[]', space=smem, size = 0x4, offset = 0x4, fixed_abs, tag = 'smem constant byte address 0x4 - core index']
  #allocation1 [shape = 'u32[144,128]{1,0:T(1,128)}', space=vmem, size = 0x12000, scoped, tag = 'internal scratch']
  %s0 = inlined_call_operand.hbm [shape: f32[16,128], index: 0, kind: input, shape index: {}]
  %s1 = inlined_call_operand.hbm [shape: f32[1,1,8,128], index: 1, kind: output, shape index: {}]
  %s2 = sld [smem:[#allocation0]]
  $region22: #{tpu_custom_call.1} parent=0
    _
  %s4 = ssub.s32 1, %s2
  %s5 = scalar_select 0, %s4, %s2
  $region1: #{tpu_custom_call.1} parent=0
    #allocation2 [shape = 'u8[8192]{0}', space=vmem, size = 0x2000, scoped, tag = 'input window, operand 0, single buffered']
    #allocation3 [shape = 's32[1]{0}', space=sflag, size = 0x4, scoped, tag = 'scoped memory for tpu_custom_call.1']
    #allocation4 [shape = 's32[1]{0}', space=sflag, size = 0x4, scoped, tag = 'scoped memory for tpu_custom_call.1']
    #allocation5 [shape = 'u8[4096]{0}', space=vmem, size = 0x1000, scoped, tag = 'output window, operand 0, single buffered']
    %6 = vsyncpa [#allocation3], 0
    %7 = vsyncpa [#allocation4], 0
    // Predicated region
    $region2: #{tpu_custom_call.1} parent=1 // pred_check
      _
    $region3: #{tpu_custom_call.1} parent=1 // pred_check_branch
      %9 = sbr.rel (0) target = $region5
    $region4: #{tpu_custom_call.1} parent=1 // pred_region
      %s10 = sadd.s32 0, 0
      %s11 = smul.u32 2, %s10
      %s13 = ssub.s32 256, 256
      %14 = vsyncadd [#allocation3], %s13
      %s15 = smul.addr %s11, 128
      %s16 = scalar_lea.hbm %s0, %s15
      %s17 = sshll.u32 [#allocation2], 4
      %s18 = int_to_ptr.vmem [resolvable:$true] %s17
      %23 = dma.hbm_to_vmem [thread:$0]  %s16, 256, %s18, [#allocation3], 128, 128, 8
    $region5: #{tpu_custom_call.1} parent=1 // pred_fallthru
      _
    // Predicated region
    $region6: #{tpu_custom_call.1} parent=1 // pred_check
      _
    $region7: #{tpu_custom_call.1} parent=1 // pred_check_branch
      %25 = sbr.rel (0) target = $region9
    $region8: #{tpu_custom_call.1} parent=1 // pred_region
      %26 = dma.done [#allocation3], 256
    $region9: #{tpu_custom_call.1} parent=1 // pred_fallthru
      _
    %s27 = sadd.s32 0, 0
    %s28 = smul.u32 2, %s27
    %p29 = scmp.eq.s32.totalorder 0, 0
    // Predicated region
    $region10: #{tpu_custom_call.1} parent=1 // pred_check
      %p30 = pneg %p29
    $region11: #{tpu_custom_call.1} parent=1 // pred_check_branch
      %32 = sbr.rel (%p30) target = $region13
    $region12: #{tpu_custom_call.1} parent=1 // pred_region
      %33 = vst [vmem:[#allocation5] sm:$0xff] 0.0
    $region13: #{tpu_custom_call.1} parent=1 // pred_fallthru
      _
    %v34 = vld [vmem:[#allocation2] sm:$0xff]
    %v35 = vld [vmem:[#allocation2 + $0x8] sm:$0xff]
    %v36 = vmul.f32 %v34, -1.0
    %v37 = vmul.f32 %v35, -1.0
    %v38 = vadd.f32 %v36, 1.0
    %v39 = vadd.f32 %v37, 1.0
    %v40 = vmax.f32 %v38, 0.0
    %v41 = vmax.f32 %v39, 0.0
    %v42 = vadd.f32 %v40, %v41
    %v43 = vld [vmem:[#allocation5] sm:$0xff]
    %v44 = vadd.f32 %v43, %v42
    %45 = vst [vmem:[#allocation5] sm:$0xff] %v44
    // Predicated region
    $region14: #{tpu_custom_call.1} parent=1 // pred_check
      _
    $region15: #{tpu_custom_call.1} parent=1 // pred_check_branch
      %47 = sbr.rel (0) target = $region17
    $region16: #{tpu_custom_call.1} parent=1 // pred_region
      %s49 = ssub.s32 128, 128
      %50 = vsyncadd [#allocation4], %s49
      %s52 = sshll.u32 [#allocation5], 4
      %s53 = int_to_ptr.vmem [resolvable:$true] %s52
      %55 = dma.vmem_to_hbm [thread:$0]  %s53, 128, %s1, [#allocation4]
    $region17: #{tpu_custom_call.1} parent=1 // pred_fallthru
      _
    // Predicated region
    $region18: #{tpu_custom_call.1} parent=1 // pred_check
      _
    $region19: #{tpu_custom_call.1} parent=1 // pred_check_branch
      %57 = sbr.rel (0) target = $region21
    $region20: #{tpu_custom_call.1} parent=1 // pred_region
      %58 = dma.done [#allocation4], 128
    $region21: #{tpu_custom_call.1} parent=1 // pred_fallthru
      _
    %59 = vsyncpa [#allocation3], 1
    %60 = vsyncpa [#allocation4], 1

</llo_original>
